<compile_context>
chip_gen: v7x
topology: tpu7x:2x2x1
jax: 0.10.0
libtpu: 0.0.40
codegen_flags: <defaults>
</compile_context>

<pallas_src>
import functools

import jax
import jax.numpy as jnp
from jax import lax
from jax.experimental import pallas as pl
from jax.experimental.pallas import tpu as pltpu

EPS = 1e-5  # nn.LayerNorm default


def _round_up(x, m):
    return ((x + m - 1) // m) * m


# ---------------------------------------------------------------------------
# Fused PreNorm(Linear) kernel:  out = LayerNorm(x) @ W + bias
# One grid step handles a (TR, D) row tile and a (D, TN) weight tile.
# ---------------------------------------------------------------------------
def _prenorm_linear_kernel(x_ref, g_ref, b_ref, w_ref, bias_ref, o_ref,
                           *, inv_d, compute_dtype):
    x = x_ref[...].astype(jnp.float32)                        # (TR, D)
    # mean / var via sum * (1/D): keeps the divide off the VALU critical path.
    mean = jnp.sum(x, axis=-1, keepdims=True) * inv_d         # (TR, 1)
    xc = x - mean
    var = jnp.sum(xc * xc, axis=-1, keepdims=True) * inv_d    # (TR, 1)
    inv = lax.rsqrt(var + EPS)                                # EUP slot
    # f32 scale/shift (gamma/beta blocks are resident (1, D) tiles).
    y = xc * inv * g_ref[...].astype(jnp.float32) + b_ref[...].astype(jnp.float32)
    # Feed the normalized tile straight into the MXU; bf16 inputs, f32 acc.
    acc = jnp.dot(y.astype(compute_dtype), w_ref[...],
                  preferred_element_type=jnp.float32)         # (TR, TN)
    o_ref[...] = (acc + bias_ref[...].astype(jnp.float32)).astype(o_ref.dtype)


def pre_norm_linear_pallas(x, gamma, beta, w, bias, *,
                           max_tile_rows=512, max_tile_n=512,
                           compute_dtype=jnp.bfloat16, out_dtype=None):
    """Fused PreNorm + Linear: fn == nn.Linear.  x: (..., D) -> (..., D_out)."""
    *lead, D = x.shape
    R = 1
    for d in lead:
        R *= d
    Dw, Dout = w.shape
    assert Dw == D
    out_dtype = out_dtype or x.dtype

    x2d = x.reshape(R, D)

    # Row tiling: pad rows to a multiple of the tile (tile is a multiple of 8).
    assert max_tile_rows % 8 == 0
    R8 = _round_up(R, 8)
    TR = min(R8, max_tile_rows)
    Rp = _round_up(R, TR)
    if Rp != R:
        x2d = jnp.pad(x2d, ((0, Rp - R), (0, 0)))

    # Output-feature tiling (keeps the weight block inside v7x's 64 MiB VMEM
    # for large models; for the demo TN == Dout).
    if Dout > max_tile_n and Dout % max_tile_n == 0:
        TN = max_tile_n
    else:
        TN = Dout

    g2d = gamma.reshape(1, D)
    b2d = beta.reshape(1, D)
    w_c = w.astype(compute_dtype)          # bf16 weight -> half HBM traffic
    bias2d = bias.reshape(1, Dout)

    # Explicit VMEM budget (double-buffered tiles + f32 intermediates), with
    # headroom; keeps us well inside v7x's 64 MiB physical VMEM.
    est = (2 * TR * D * x2d.dtype.itemsize
           + 2 * D * TN * jnp.dtype(compute_dtype).itemsize
           + 2 * TR * TN * jnp.dtype(out_dtype).itemsize
           + 2 * (2 * D + Dout) * 4
           + 2 * TR * D * 4 + TR * TN * 4)
    vmem_limit = int(min(max(est * 2, 16 * 1024 * 1024), 48 * 1024 * 1024))

    kernel = functools.partial(_prenorm_linear_kernel,
                               inv_d=1.0 / D, compute_dtype=compute_dtype)

    out2d = pl.pallas_call(
        kernel,
        out_shape=jax.ShapeDtypeStruct((Rp, Dout), out_dtype),
        grid_spec=pltpu.PrefetchScalarGridSpec(
            num_scalar_prefetch=0,
            grid=(Rp // TR, Dout // TN),
            in_specs=[
                pl.BlockSpec((TR, D), lambda i, j: (i, 0)),    # x rows
                pl.BlockSpec((1, D), lambda i, j: (0, 0)),     # gamma
                pl.BlockSpec((1, D), lambda i, j: (0, 0)),     # beta
                pl.BlockSpec((D, TN), lambda i, j: (0, j)),    # weight
                pl.BlockSpec((1, TN), lambda i, j: (0, j)),    # linear bias
            ],
            out_specs=pl.BlockSpec((TR, TN), lambda i, j: (i, j)),
        ),
        compiler_params=pltpu.CompilerParams(
            dimension_semantics=("parallel", "parallel"),
            vmem_limit_bytes=vmem_limit),
    )(x2d, g2d, b2d, w_c, bias2d)

    return out2d[:R].reshape(*lead, Dout)


# ---------------------------------------------------------------------------
# Standalone LayerNorm kernel (for PreNorm with an arbitrary wrapped `fn`).
# ---------------------------------------------------------------------------
def _layernorm_kernel(x_ref, g_ref, b_ref, o_ref, *, inv_d):
    x = x_ref[...].astype(jnp.float32)
    mean = jnp.sum(x, axis=-1, keepdims=True) * inv_d
    xc = x - mean
    var = jnp.sum(xc * xc, axis=-1, keepdims=True) * inv_d
    inv = lax.rsqrt(var + EPS)
    y = xc * inv * g_ref[...].astype(jnp.float32) + b_ref[...].astype(jnp.float32)
    o_ref[...] = y.astype(o_ref.dtype)


def layernorm_pallas(x, gamma, beta, *, max_tile_rows=1024):
    *lead, D = x.shape
    R = 1
    for d in lead:
        R *= d
    x2d = x.reshape(R, D)

    assert max_tile_rows % 8 == 0
    R8 = _round_up(R, 8)
    TR = min(R8, max_tile_rows)
    Rp = _round_up(R, TR)
    if Rp != R:
        x2d = jnp.pad(x2d, ((0, Rp - R), (0, 0)))

    g2d = gamma.reshape(1, D)
    b2d = beta.reshape(1, D)

    out2d = pl.pallas_call(
        functools.partial(_layernorm_kernel, inv_d=1.0 / D),
        out_shape=jax.ShapeDtypeStruct((Rp, D), x.dtype),
        grid_spec=pltpu.PrefetchScalarGridSpec(
            num_scalar_prefetch=0,
            grid=(Rp // TR,),
            in_specs=[
                pl.BlockSpec((TR, D), lambda i: (i, 0)),
                pl.BlockSpec((1, D), lambda i: (0, 0)),
                pl.BlockSpec((1, D), lambda i: (0, 0)),
            ],
            out_specs=pl.BlockSpec((TR, D), lambda i: (i, 0)),
        ),
        compiler_params=pltpu.CompilerParams(
            dimension_semantics=("parallel",)),
    )(x2d, g2d, b2d)

    return out2d[:R].reshape(*lead, D)


def pre_norm(x, gamma, beta, fn):
    """Generic PreNorm: fn(LayerNorm(x)) for an arbitrary wrapped fn."""
    return fn(layernorm_pallas(x, gamma, beta))


if __name__ == "__main__":
    # Small but lane-dense shapes: D and D_OUT are multiples of 128.
    B, S, D, D_OUT = 2, 8, 128, 128

    key = jax.random.PRNGKey(0)
    kx, kw, kb, kg, kbe = jax.random.split(key, 5)

    x = jax.random.normal(kx, (B, S, D), dtype=jnp.float32)

    # LayerNorm affine params (perturbed from torch default to exercise them).
    gamma = 1.0 + 0.1 * jax.random.normal(kg, (D,), dtype=jnp.float32)
    beta = 0.1 * jax.random.normal(kbe, (D,), dtype=jnp.float32)

    # The wrapped `fn` for this synthetic instantiation: a Linear layer.
    w = jax.random.normal(kw, (D, D_OUT), dtype=jnp.float32) * 0.02
    b = jax.random.normal(kb, (D_OUT,), dtype=jnp.float32) * 0.02

    # Fused PreNorm + Linear (single pallas_call, no HBM round-trip of normed).
    out = pre_norm_linear_pallas(x, gamma, beta, w, b,
                                 compute_dtype=jnp.bfloat16)
    out = jax.block_until_ready(out)

    # --- reference (same bf16 matmul-input rounding, f32 accumulation) ------
    xf = x.astype(jnp.float32)
    mean = jnp.mean(xf, axis=-1, keepdims=True)
    var = jnp.mean((xf - mean) ** 2, axis=-1, keepdims=True)
    normed_ref = (xf - mean) * lax.rsqrt(var + EPS) * gamma + beta
    ref = (jnp.dot(normed_ref.astype(jnp.bfloat16).reshape(B * S, D),
                   w.astype(jnp.bfloat16),
                   preferred_element_type=jnp.float32) + b)
    ref = ref.reshape(B, S, D_OUT).astype(x.dtype)

    assert out.shape == (B, S, D_OUT)
    assert jnp.allclose(out, ref, atol=2e-2, rtol=2e-2)

    # Also check the standalone LN kernel used by the generic pre_norm path.
    ln_out = jax.block_until_ready(layernorm_pallas(x, gamma, beta))
    assert jnp.allclose(ln_out, normed_ref.astype(x.dtype), atol=1e-4, rtol=1e-4)

    print("KERNEL_OK")
</pallas_src>

<mosaic_0001>
module attributes {stable_mosaic.version = 11 : i64} {
  func.func @_prenorm_linear_kernel(%arg0: i32, %arg1: i32, %arg2: memref<16x128xf32, #tpu.memory_space<vmem>>, %arg3: memref<1x128xf32, #tpu.memory_space<vmem>>, %arg4: memref<1x128xf32, #tpu.memory_space<vmem>>, %arg5: memref<128x128xbf16, #tpu.memory_space<vmem>>, %arg6: memref<1x128xf32, #tpu.memory_space<vmem>>, %arg7: memref<16x128xf32, #tpu.memory_space<vmem>>) attributes {dimension_semantics = [#tpu.dimension_semantics<parallel>, #tpu.dimension_semantics<parallel>], iteration_bounds = array<i64: 1, 1>, scalar_prefetch = 0 : i64, scratch_operands = 0 : i64, tpu.core_type = #tpu.core_type<tc>, window_params = [{transform_indices = @transform_0, window_bounds = array<i64: 16, 128>}, {pipeline_mode = #tpu.pipeline_mode<synchronous>, transform_indices = @transform_1, window_bounds = array<i64: 1, 128>}, {pipeline_mode = #tpu.pipeline_mode<synchronous>, transform_indices = @transform_2, window_bounds = array<i64: 1, 128>}, {transform_indices = @transform_3, window_bounds = array<i64: 128, 128>}, {transform_indices = @transform_4, window_bounds = array<i64: 1, 128>}, {transform_indices = @transform_5, window_bounds = array<i64: 16, 128>}]} {
    %c0 = arith.constant 0 : index
    %c0_0 = arith.constant 0 : index
    %0 = vector.load %arg2[%c0, %c0_0] : memref<16x128xf32, #tpu.memory_space<vmem>>, vector<16x128xf32>
    %cst = arith.constant dense<0.000000e+00> : vector<16xf32>
    %1 = vector.multi_reduction <add>, %0, %cst [1] : vector<16x128xf32> to vector<16xf32>
    %2 = vector.shape_cast %1 : vector<16xf32> to vector<16x1xf32>
    %cst_1 = arith.constant 7.812500e-03 : f32
    %3 = vector.broadcast %cst_1 : f32 to vector<16x1xf32>
    %4 = arith.mulf %2, %3 : vector<16x1xf32>
    %5 = vector.broadcast %4 : vector<16x1xf32> to vector<16x128xf32>
    %6 = arith.subf %0, %5 : vector<16x128xf32>
    %7 = arith.mulf %6, %6 : vector<16x128xf32>
    %cst_2 = arith.constant dense<0.000000e+00> : vector<16xf32>
    %8 = vector.multi_reduction <add>, %7, %cst_2 [1] : vector<16x128xf32> to vector<16xf32>
    %9 = vector.shape_cast %8 : vector<16xf32> to vector<16x1xf32>
    %cst_3 = arith.constant 7.812500e-03 : f32
    %10 = vector.broadcast %cst_3 : f32 to vector<16x1xf32>
    %11 = arith.mulf %9, %10 : vector<16x1xf32>
    %cst_4 = arith.constant 9.99999974E-6 : f32
    %12 = vector.broadcast %cst_4 : f32 to vector<16x1xf32>
    %13 = arith.addf %11, %12 : vector<16x1xf32>
    %14 = math.rsqrt %13 : vector<16x1xf32>
    %15 = vector.broadcast %14 : vector<16x1xf32> to vector<16x128xf32>
    %16 = arith.mulf %6, %15 : vector<16x128xf32>
    %c0_5 = arith.constant 0 : index
    %c0_6 = arith.constant 0 : index
    %17 = vector.load %arg3[%c0_5, %c0_6] : memref<1x128xf32, #tpu.memory_space<vmem>>, vector<1x128xf32>
    %18 = vector.broadcast %17 : vector<1x128xf32> to vector<16x128xf32>
    %19 = arith.mulf %16, %18 : vector<16x128xf32>
    %c0_7 = arith.constant 0 : index
    %c0_8 = arith.constant 0 : index
    %20 = vector.load %arg4[%c0_7, %c0_8] : memref<1x128xf32, #tpu.memory_space<vmem>>, vector<1x128xf32>
    %21 = vector.broadcast %20 : vector<1x128xf32> to vector<16x128xf32>
    %22 = arith.addf %19, %21 : vector<16x128xf32>
    %23 = arith.truncf %22 : vector<16x128xf32> to vector<16x128xbf16>
    %c0_9 = arith.constant 0 : index
    %c0_10 = arith.constant 0 : index
    %24 = vector.load %arg5[%c0_9, %c0_10] : memref<128x128xbf16, #tpu.memory_space<vmem>>, vector<128x128xbf16>
    %cst_11 = arith.constant dense<0.000000e+00> : vector<16x128xf32>
    %25 = tpu.matmul %23, %24, %cst_11 {dimension_numbers = #tpu.dot_dimension_numbers<[1], [0], [0], [1], [0, 0, 1, 1], [], []>} : vector<16x128xbf16>, vector<128x128xbf16>, vector<16x128xf32> -> vector<16x128xf32>
    %c0_12 = arith.constant 0 : index
    %c0_13 = arith.constant 0 : index
    %26 = vector.load %arg6[%c0_12, %c0_13] : memref<1x128xf32, #tpu.memory_space<vmem>>, vector<1x128xf32>
    %27 = vector.broadcast %26 : vector<1x128xf32> to vector<16x128xf32>
    %28 = arith.addf %25, %27 : vector<16x128xf32>
    %c0_14 = arith.constant 0 : index
    %c0_15 = arith.constant 0 : index
    %29 = vector.load %arg7[%c0_14, %c0_15] : memref<16x128xf32, #tpu.memory_space<vmem>>, vector<16x128xf32>
    tpu.vector_store %arg7[%c0_14, %c0_15], %28 {strides = array<i32>} : memref<16x128xf32, #tpu.memory_space<vmem>>, vector<16x128xf32>,
    return
  }
  func.func @transform_0(%arg0: i32, %arg1: i32) -> (i32, i32) {
    %c0_i32 = arith.constant 0 : i32
    %c0_i32_0 = arith.constant 0 : i32
    return %arg0, %c0_i32 : i32, i32
  }
  func.func @transform_1(%arg0: i32, %arg1: i32) -> (i32, i32) {
    %c0_i32 = arith.constant 0 : i32
    %c0_i32_0 = arith.constant 0 : i32
    %c0_i32_1 = arith.constant 0 : i32
    return %c0_i32, %c0_i32_0 : i32, i32
  }
  func.func @transform_2(%arg0: i32, %arg1: i32) -> (i32, i32) {
    %c0_i32 = arith.constant 0 : i32
    %c0_i32_0 = arith.constant 0 : i32
    %c0_i32_1 = arith.constant 0 : i32
    return %c0_i32, %c0_i32_0 : i32, i32
  }
  func.func @transform_3(%arg0: i32, %arg1: i32) -> (i32, i32) {
    %c0_i32 = arith.constant 0 : i32
    %c0_i32_0 = arith.constant 0 : i32
    return %c0_i32, %arg1 : i32, i32
  }
  func.func @transform_4(%arg0: i32, %arg1: i32) -> (i32, i32) {
    %c0_i32 = arith.constant 0 : i32
    %c0_i32_0 = arith.constant 0 : i32
    return %c0_i32, %arg1 : i32, i32
  }
  func.func @transform_5(%arg0: i32, %arg1: i32) -> (i32, i32) {
    %c0_i32 = arith.constant 0 : i32
    return %arg0, %arg1 : i32, i32
  }
}

</mosaic_0001>

<llo_original>
// kernel: tpu_custom_call.1
$region0: #{tpu_custom_call.1}
  #allocation0 [shape = 'u32[]', space=smem, size = 0x4, offset = 0x4, fixed_abs, tag = 'smem constant byte address 0x4 - core index']
  #allocation1 [shape = 'u32[144,128]{1,0:T(1,128)}', space=vmem, size = 0x12000, scoped, tag = 'internal scratch']
  %s0 = inlined_call_operand.hbm [shape: f32[16,128], index: 0, kind: input, shape index: {}]
  %s1 = inlined_call_operand.vmem [shape: f32[1,128], index: 1, kind: input, shape index: {}]
  %s2 = inlined_call_operand.vmem [shape: f32[1,128], index: 2, kind: input, shape index: {}]
  %s3 = inlined_call_operand.hbm [shape: bf16[128,128], index: 3, kind: input, shape index: {}]
  %s4 = inlined_call_operand.vmem [shape: f32[1,128], index: 4, kind: input, shape index: {}]
  %s5 = inlined_call_operand.hbm [shape: f32[16,128], index: 5, kind: output, shape index: {}]
  %s6 = sld [smem:[#allocation0]]
  $region38: #{tpu_custom_call.1} parent=0
    _
  %s8 = ssub.s32 1, %s6
  %s9 = scalar_select 0, %s8, %s6
  $region1: #{tpu_custom_call.1} parent=0
    #allocation2 [shape = 'u8[8192]{0}', space=vmem, size = 0x2000, scoped, tag = 'input window, operand 0, single buffered']
    #allocation3 [shape = 's32[1]{0}', space=sflag, size = 0x4, scoped, tag = 'scoped memory for tpu_custom_call.1']
    #allocation4 [shape = 's32[1]{0}', space=sflag, size = 0x4, scoped, tag = 'scoped memory for tpu_custom_call.1']
    #allocation5 [shape = 'u8[32768]{0}', space=vmem, size = 0x8000, scoped, tag = 'input window, operand 3, single buffered']
    #allocation6 [shape = 's32[1]{0}', space=sflag, size = 0x4, scoped, tag = 'scoped memory for tpu_custom_call.1']
    #allocation7 [shape = 'u8[8192]{0}', space=vmem, size = 0x2000, scoped, tag = 'output window, operand 0, single buffered']
    %10 = vsyncpa [#allocation3], 0
    %11 = vsyncpa [#allocation6], 0
    %12 = vsyncpa [#allocation4], 0
    // Predicated region
    $region2: #{tpu_custom_call.1} parent=1 // pred_check
      _
    $region3: #{tpu_custom_call.1} parent=1 // pred_check_branch
      %14 = sbr.rel (0) target = $region5
    $region4: #{tpu_custom_call.1} parent=1 // pred_region
      %s16 = ssub.s32 256, 256
      %17 = vsyncadd [#allocation3], %s16
      %s18 = sshll.u32 [#allocation2], 4
      %s19 = int_to_ptr.vmem [resolvable:$true] %s18
      %24 = dma.hbm_to_vmem [thread:$0]  %s0, 256, %s19, [#allocation3], 128, 128, 8
    $region5: #{tpu_custom_call.1} parent=1 // pred_fallthru
      _
    // Predicated region
    $region6: #{tpu_custom_call.1} parent=1 // pred_check
      _
    $region7: #{tpu_custom_call.1} parent=1 // pred_check_branch
      %26 = sbr.rel (0) target = $region9
    $region8: #{tpu_custom_call.1} parent=1 // pred_region
      _
    $region9: #{tpu_custom_call.1} parent=1 // pred_fallthru
      _
    // Predicated region
    $region10: #{tpu_custom_call.1} parent=1 // pred_check
      _
    $region11: #{tpu_custom_call.1} parent=1 // pred_check_branch
      %28 = sbr.rel (0) target = $region13
    $region12: #{tpu_custom_call.1} parent=1 // pred_region
      _
    $region13: #{tpu_custom_call.1} parent=1 // pred_fallthru
      _
    // Predicated region
    $region14: #{tpu_custom_call.1} parent=1 // pred_check
      _
    $region15: #{tpu_custom_call.1} parent=1 // pred_check_branch
      %30 = sbr.rel (0) target = $region17
    $region16: #{tpu_custom_call.1} parent=1 // pred_region
      %s32 = ssub.s32 1024, 1024
      %33 = vsyncadd [#allocation6], %s32
      %s34 = sshll.u32 [#allocation5], 4
      %s35 = int_to_ptr.vmem [resolvable:$true] %s34
      %40 = dma.hbm_to_vmem [thread:$0]  %s3, 1024, %s35, [#allocation6], 64, 64, 4
    $region17: #{tpu_custom_call.1} parent=1 // pred_fallthru
      _
    // Predicated region
    $region18: #{tpu_custom_call.1} parent=1 // pred_check
      _
    $region19: #{tpu_custom_call.1} parent=1 // pred_check_branch
      %42 = sbr.rel (0) target = $region21
    $region20: #{tpu_custom_call.1} parent=1 // pred_region
      _
    $region21: #{tpu_custom_call.1} parent=1 // pred_fallthru
      _
    // Predicated region
    $region22: #{tpu_custom_call.1} parent=1 // pred_check
      _
    $region23: #{tpu_custom_call.1} parent=1 // pred_check_branch
      %44 = sbr.rel (0) target = $region25
    $region24: #{tpu_custom_call.1} parent=1 // pred_region
      %45 = dma.done [#allocation3], 256
    $region25: #{tpu_custom_call.1} parent=1 // pred_fallthru
      _
    // Predicated region
    $region26: #{tpu_custom_call.1} parent=1 // pred_check
      _
    $region27: #{tpu_custom_call.1} parent=1 // pred_check_branch
      %47 = sbr.rel (0) target = $region29
    $region28: #{tpu_custom_call.1} parent=1 // pred_region
      %48 = dma.done [#allocation6], 1024
    $region29: #{tpu_custom_call.1} parent=1 // pred_fallthru
      _
    %v50 = vld [vmem:[#allocation2] sm:$0xff]
    %v51 = vld [vmem:[#allocation2 + $0x8] sm:$0xff]
    %52 = vadd.xlane.f32.xlu0 %v50
    %v53 = vpop.xlane.xlu0 %52
    %54 = vadd.xlane.f32.xlu0 %v51
    %v55 = vpop.xlane.xlu0 %54
    %v56 = vmul.f32 %v53, 0.0078125
    %v57 = vmul.f32 %v55, 0.0078125
    %v58 = vsub.f32 %v50, %v56
    %v59 = vsub.f32 %v51, %v57
    %v60 = vmul.f32 %v58, %v58
    %v61 = vmul.f32 %v59, %v59
    %62 = vadd.xlane.f32.xlu0 %v60
    %v63 = vpop.xlane.xlu0 %62
    %64 = vadd.xlane.f32.xlu0 %v61
    %v65 = vpop.xlane.xlu0 %64
    %v66 = vmul.f32 %v63, 0.0078125
    %v67 = vmul.f32 %v65, 0.0078125
    %v68 = vadd.f32 %v66, 1e-05
    %v69 = vadd.f32 %v67, 1e-05
    %v70 = vrsqrt.pop %v68
    %v71 = vrsqrt.pop %v69
    %v72 = vmul.f32 %v58, %v70
    %v73 = vmul.f32 %v59, %v71
    %v74 = vld [vmem:[%s1] sm:$0x1]
    %v76 = vlaneseq
    %v77 = vshrl.u32 %v76, 7
    %v78 = vsub.s32 0, %v77
    %v79 = vrot.slane %v74, %v78
    %v81 = vmul.f32 %v72, %v79
    %v82 = vmul.f32 %v73, %v79
    %v83 = vld [vmem:[%s2] sm:$0x1]
    %v85 = vlaneseq
    %v86 = vshrl.u32 %v85, 7
    %v87 = vsub.s32 0, %v86
    %v88 = vrot.slane %v83, %v87
    %v90 = vadd.f32 %v81, %v88
    %v91 = vadd.f32 %v82, %v88
    %v92 = vpack.c.bf16 %v91, %v90
    %v93 = vld [vmem:[#allocation5] sm:$0xf]
    %v94 = vld [vmem:[#allocation5 + $0x4] sm:$0xf]
    %v95 = vld [vmem:[#allocation5 + $0x8] sm:$0xf]
    %v96 = vld [vmem:[#allocation5 + $0xc] sm:$0xf]
    %v97 = vld [vmem:[#allocation5 + $0x10] sm:$0xf]
    %v98 = vld [vmem:[#allocation5 + $0x14] sm:$0xf]
    %v99 = vld [vmem:[#allocation5 + $0x18] sm:$0xf]
    %v100 = vld [vmem:[#allocation5 + $0x1c] sm:$0xf]
    %v101 = vld [vmem:[#allocation5 + $0x20] sm:$0xf]
    %v102 = vld [vmem:[#allocation5 + $0x24] sm:$0xf]
    %v103 = vld [vmem:[#allocation5 + $0x28] sm:$0xf]
    %v104 = vld [vmem:[#allocation5 + $0x2c] sm:$0xf]
    %v105 = vld [vmem:[#allocation5 + $0x30] sm:$0xf]
    %v106 = vld [vmem:[#allocation5 + $0x34] sm:$0xf]
    %v107 = vld [vmem:[#allocation5 + $0x38] sm:$0xf]
    %v108 = vld [vmem:[#allocation5 + $0x3c] sm:$0xf]
    %v109 = vld [vmem:[%s4] sm:$0x1]
    %v111 = vlaneseq
    %v112 = vshrl.u32 %v111, 7
    %v113 = vsub.s32 0, %v112
    %v114 = vrot.slane %v109, %v113
    %v132 = vunpack.c.l.b16 %v93
    %v133 = vunpack.c.l.b16 %v94
    %v134 = vunpack.c.l.b16 %v95
    %v135 = vunpack.c.l.b16 %v96
    %v136 = vunpack.c.l.b16 %v97
    %v137 = vunpack.c.l.b16 %v98
    %v138 = vunpack.c.l.b16 %v99
    %v139 = vunpack.c.l.b16 %v100
    %v140 = vunpack.c.l.b16 %v101
    %v141 = vunpack.c.l.b16 %v102
    %v142 = vunpack.c.l.b16 %v103
    %v143 = vunpack.c.l.b16 %v104
    %v144 = vunpack.c.l.b16 %v105
    %v145 = vunpack.c.l.b16 %v106
    %v146 = vunpack.c.l.b16 %v107
    %v147 = vunpack.c.l.b16 %v108
    %v148 = vpack.c.b16 %v133, %v132
    %v149 = vpack.c.b16 %v135, %v134
    %v150 = vpack.c.b16 %v137, %v136
    %v151 = vpack.c.b16 %v139, %v138
    %v152 = vpack.c.b16 %v141, %v140
    %v153 = vpack.c.b16 %v143, %v142
    %v154 = vpack.c.b16 %v145, %v144
    %v155 = vpack.c.b16 %v147, %v146
    %164 = vmatprep.subr.bf16.mxu0 0
    %165 = vmatpush1.bf16.msra.mxu0 %v148
    %166 = vmatprep.subr.bf16.mxu0 0
    %167 = vmatpush1.bf16.msra.mxu0 %v149
    %168 = vmatprep.subr.bf16.mxu0 0
    %169 = vmatpush1.bf16.msra.mxu0 %v150
    %170 = vmatprep.subr.bf16.mxu0 0
    %171 = vmatpush1.bf16.msra.mxu0 %v151
    %172 = vmatprep.subr.bf16.mxu0 0
    %173 = vmatpush1.bf16.msra.mxu0 %v152
    %174 = vmatprep.subr.bf16.mxu0 0
    %175 = vmatpush1.bf16.msra.mxu0 %v153
    %176 = vmatprep.subr.bf16.mxu0 0
    %177 = vmatpush1.bf16.msra.mxu0 %v154
    %178 = vmatprep.subr.bf16.mxu0 0
    %179 = vmatpush1.bf16.msra.mxu0 %v155
    %180 = vmatprep.subr.bf16.mxu0 0
    %181 = vmatpush1.bf16.msra.mxu0 0
    %182 = vmatprep.subr.bf16.mxu0 0
    %183 = vmatpush1.bf16.msra.mxu0 0
    %184 = vmatprep.subr.bf16.mxu0 0
    %185 = vmatpush1.bf16.msra.mxu0 0
    %186 = vmatprep.subr.bf16.mxu0 0
    %187 = vmatpush1.bf16.msra.mxu0 0
    %188 = vmatprep.subr.bf16.mxu0 0
    %189 = vmatpush1.bf16.msra.mxu0 0
    %190 = vmatprep.subr.bf16.mxu0 0
    %191 = vmatpush1.bf16.msra.mxu0 0
    %192 = vmatprep.subr.bf16.mxu0 0
    %193 = vmatpush1.bf16.msra.mxu0 0
    %194 = vmatprep.subr.bf16.mxu0 0
    %195 = vmatpush1.bf16.msra.mxu0 0
    %196 = vmatprep.mubr.bf16.mxu0 0
    %197 = vmatmul.mubr.bf16.gmra.mrb[0].mxu0 %v92
    %v198 = vpop.f32.mrb[0].mxu0
    %v199 = vadd.f32 %v114, %v198
    %v200 = vpop.f32.mrb[0].mxu0
    %v201 = vpop.f32.mrb[0].mxu0
    %v202 = vadd.f32 %v114, %v201
    %v203 = vpop.f32.mrb[0].mxu0
    %204 = vdwg.mxu0
    %205 = vst [vmem:[#allocation7] sm:$0xff] %v199
    %206 = vst [vmem:[#allocation7 + $0x8] sm:$0xff] %v202
    // Predicated region
    $region30: #{tpu_custom_call.1} parent=1 // pred_check
      _
    $region31: #{tpu_custom_call.1} parent=1 // pred_check_branch
      %208 = sbr.rel (0) target = $region33
    $region32: #{tpu_custom_call.1} parent=1 // pred_region
      %s210 = ssub.s32 256, 256
      %211 = vsyncadd [#allocation4], %s210
      %s212 = sshll.u32 [#allocation7], 4
      %s213 = int_to_ptr.vmem [resolvable:$true] %s212
      %218 = dma.vmem_to_hbm [thread:$0]  %s213, 256, %s5, [#allocation4], 128, 128, 8
    $region33: #{tpu_custom_call.1} parent=1 // pred_fallthru
      _
    // Predicated region
    $region34: #{tpu_custom_call.1} parent=1 // pred_check
      _
    $region35: #{tpu_custom_call.1} parent=1 // pred_check_branch
      %220 = sbr.rel (0) target = $region37
    $region36: #{tpu_custom_call.1} parent=1 // pred_region
      %221 = dma.done [#allocation4], 256
    $region37: #{tpu_custom_call.1} parent=1 // pred_fallthru
      _
    %222 = vsyncpa [#allocation3], 1
    %223 = vsyncpa [#allocation6], 1
    %224 = vsyncpa [#allocation4], 1

</llo_original>
